<compile_context>
chip_gen: v7x
topology: tpu7x:2x2x1
jax: 0.10.0
libtpu: 0.0.40
codegen_flags: <defaults>
</compile_context>

<pallas_src>
import jax
import jax.numpy as jnp
from jax.experimental import pallas as pl
from jax.experimental.pallas import tpu as pltpu


def dis_tc_kernel(hs_ref, hu_ref, w1a_ref, w1b_ref, b1_ref, w2_ref, b2_ref, o_ref):
    # fc1 with the concat split algebraically; bf16 operands, f32 accumulation.
    pre = jnp.dot(hs_ref[...], w1a_ref[...], preferred_element_type=jnp.float32)
    pre = pre + jnp.dot(hu_ref[...], w1b_ref[...], preferred_element_type=jnp.float32)
    hidden = jax.nn.sigmoid(pre + b1_ref[...])  # f32 elementwise (EUP sigmoid)

    # fc2: output width 1 -> VPU multiply + lane reduce (MXU would waste 255/256 cols).
    logit = jnp.sum(hidden * w2_ref[...], axis=-1, keepdims=True) + b2_ref[0, 0]
    o_ref[...] = jax.nn.sigmoid(logit).astype(o_ref.dtype)


def _pick_row_tile(m):
    for cand in (1024, 512, 256, 128, 64, 32, 16, 8):
        if m % cand == 0:
            return cand
    return m  # fallback: one block covering all rows (always legal: equals full dim)


def dis_tc_forward(hs, hu, w1, b1, w2, b2, *, matmul_dtype=jnp.bfloat16):
    """hs, hu: [B, S_dim]; w1: [2*S_dim, nhF]; b1: [nhF]; w2: [nhF, 1]; b2: [1]."""
    B, S = hs.shape
    assert hu.shape == (B, S)
    D = 2 * S
    H = w1.shape[1]
    assert w1.shape == (D, H) and b1.shape == (H,)
    assert w2.shape == (H, 1) and b2.shape == (1,)
    assert H % 128 == 0, "hidden width must be a multiple of 128 (lane alignment)"

    # Split w1 so the concat never materializes; cast matmul operands to bf16.
    w1a = w1[:S].astype(matmul_dtype)
    w1b = w1[S:].astype(matmul_dtype)
    hs_c = hs.astype(matmul_dtype)
    hu_c = hu.astype(matmul_dtype)
    b1_row = b1.reshape(1, H).astype(jnp.float32)
    w2_row = w2.reshape(1, H).astype(jnp.float32)   # transposed row for VPU reduce
    b2_s = b2.reshape(1, 1).astype(jnp.float32)     # scalar, lives in SMEM

    tm = _pick_row_tile(B)
    grid = (B // tm,)

    # NOTE: for very large B a lane-dense [B//128, 128] output layout would avoid
    # masked single-element stores; at these sizes the [B, 1] output is fine.
    out = pl.pallas_call(
        dis_tc_kernel,
        out_shape=jax.ShapeDtypeStruct((B, 1), hs.dtype),
        grid_spec=pltpu.PrefetchScalarGridSpec(
            num_scalar_prefetch=0,
            grid=grid,
            in_specs=[
                pl.BlockSpec((tm, S), lambda i: (i, 0)),            # hs rows (streamed)
                pl.BlockSpec((tm, S), lambda i: (i, 0)),            # hu rows (streamed)
                pl.BlockSpec((S, H), lambda i: (0, 0)),             # w1[:S]   (resident)
                pl.BlockSpec((S, H), lambda i: (0, 0)),             # w1[S:]   (resident)
                pl.BlockSpec((1, H), lambda i: (0, 0)),             # b1 row   (resident)
                pl.BlockSpec((1, H), lambda i: (0, 0)),             # w2 row   (resident)
                pl.BlockSpec(memory_space=pltpu.MemorySpace.SMEM),  # b2 scalar
            ],
            out_specs=pl.BlockSpec((tm, 1), lambda i: (i, 0)),
        ),
        compiler_params=pltpu.CompilerParams(
            dimension_semantics=("parallel",),  # independent rows -> v7x 2-TC sharding
        ),
    )(hs_c, hu_c, w1a, w1b, b1_row, w2_row, b2_s)
    return out


def init_params(key, S_dim, nhF):
    """Match PyTorch weights_init: Linear weight ~ N(0, 0.02), bias = 0."""
    D = 2 * S_dim
    k1, k2 = jax.random.split(key)
    w1 = 0.02 * jax.random.normal(k1, (D, nhF), jnp.float32)
    b1 = jnp.zeros((nhF,), jnp.float32)
    w2 = 0.02 * jax.random.normal(k2, (nhF, 1), jnp.float32)
    b2 = jnp.zeros((1,), jnp.float32)
    return w1, b1, w2, b2


def reference_forward(hs, hu, w1, b1, w2, b2, *, matmul_dtype=jnp.float32):
    x = jnp.concatenate([hs, hu], axis=1)
    pre = jnp.dot(x.astype(matmul_dtype), w1.astype(matmul_dtype),
                  preferred_element_type=jnp.float32)
    h = jax.nn.sigmoid(pre + b1)
    return jax.nn.sigmoid(h @ w2 + b2)


if __name__ == "__main__":
    # Small shapes consistent with the module: B=8 rows, S_dim=32 (D=64), nhF=2048.
    B, S_dim, nhF = 8, 32, 2048
    key = jax.random.PRNGKey(0)
    k_hs, k_hu, k_p = jax.random.split(key, 3)
    hs = jax.random.normal(k_hs, (B, S_dim), jnp.float32)
    hu = jax.random.normal(k_hu, (B, S_dim), jnp.float32)
    w1, b1, w2, b2 = init_params(k_p, S_dim, nhF)

    out = dis_tc_forward(hs, hu, w1, b1, w2, b2)
    out = jax.block_until_ready(out)
    assert out.shape == (B, 1), out.shape

    # Tight check vs a precision-matched (bf16-matmul) reference.
    ref_bf16 = reference_forward(hs, hu, w1, b1, w2, b2, matmul_dtype=jnp.bfloat16)
    assert jnp.allclose(out, ref_bf16, atol=1e-3, rtol=1e-3), "mismatch vs bf16 reference"

    # Loose check vs the pure-f32 reference (bf16 MXU operands => ~1e-3 level diffs).
    ref_f32 = reference_forward(hs, hu, w1, b1, w2, b2, matmul_dtype=jnp.float32)
    assert jnp.allclose(out, ref_f32, atol=2e-2, rtol=2e-2), "mismatch vs f32 reference"

    print("KERNEL_OK")
</pallas_src>

<mosaic_0001>
module attributes {stable_mosaic.version = 11 : i64} {
  func.func @dis_tc_kernel(%arg0: i32, %arg1: memref<8x32xbf16, #tpu.memory_space<vmem>>, %arg2: memref<8x32xbf16, #tpu.memory_space<vmem>>, %arg3: memref<32x2048xbf16, #tpu.memory_space<vmem>>, %arg4: memref<32x2048xbf16, #tpu.memory_space<vmem>>, %arg5: memref<1x2048xf32, #tpu.memory_space<vmem>>, %arg6: memref<1x2048xf32, #tpu.memory_space<vmem>>, %arg7: memref<1x1xf32, #tpu.memory_space<smem>>, %arg8: memref<8x1xf32, #tpu.memory_space<vmem>>) attributes {dimension_semantics = [#tpu.dimension_semantics<parallel>], iteration_bounds = array<i64: 1>, scalar_prefetch = 0 : i64, scratch_operands = 0 : i64, tpu.core_type = #tpu.core_type<tc>, window_params = [{transform_indices = @transform_0, window_bounds = array<i64: 8, 32>}, {transform_indices = @transform_1, window_bounds = array<i64: 8, 32>}, {pipeline_mode = #tpu.pipeline_mode<synchronous>, transform_indices = @transform_2, window_bounds = array<i64: 32, 2048>}, {pipeline_mode = #tpu.pipeline_mode<synchronous>, transform_indices = @transform_3, window_bounds = array<i64: 32, 2048>}, {pipeline_mode = #tpu.pipeline_mode<synchronous>, transform_indices = @transform_4, window_bounds = array<i64: 1, 2048>}, {pipeline_mode = #tpu.pipeline_mode<synchronous>, transform_indices = @transform_5, window_bounds = array<i64: 1, 2048>}, {transform_indices = @transform_6, window_bounds = array<i64: 1, 1>}, {transform_indices = @transform_7, window_bounds = array<i64: 8, 1>}]} {
    %c0 = arith.constant 0 : index
    %c0_0 = arith.constant 0 : index
    %0 = vector.load %arg1[%c0, %c0_0] : memref<8x32xbf16, #tpu.memory_space<vmem>>, vector<8x32xbf16>
    %c0_1 = arith.constant 0 : index
    %c0_2 = arith.constant 0 : index
    %1 = vector.load %arg3[%c0_1, %c0_2] : memref<32x2048xbf16, #tpu.memory_space<vmem>>, vector<32x2048xbf16>
    %cst = arith.constant dense<0.000000e+00> : vector<8x2048xf32>
    %2 = tpu.matmul %0, %1, %cst {dimension_numbers = #tpu.dot_dimension_numbers<[1], [0], [0], [1], [0, 0, 1, 1], [], []>} : vector<8x32xbf16>, vector<32x2048xbf16>, vector<8x2048xf32> -> vector<8x2048xf32>
    %c0_3 = arith.constant 0 : index
    %c0_4 = arith.constant 0 : index
    %3 = vector.load %arg2[%c0_3, %c0_4] : memref<8x32xbf16, #tpu.memory_space<vmem>>, vector<8x32xbf16>
    %c0_5 = arith.constant 0 : index
    %c0_6 = arith.constant 0 : index
    %4 = vector.load %arg4[%c0_5, %c0_6] : memref<32x2048xbf16, #tpu.memory_space<vmem>>, vector<32x2048xbf16>
    %cst_7 = arith.constant dense<0.000000e+00> : vector<8x2048xf32>
    %5 = tpu.matmul %3, %4, %cst_7 {dimension_numbers = #tpu.dot_dimension_numbers<[1], [0], [0], [1], [0, 0, 1, 1], [], []>} : vector<8x32xbf16>, vector<32x2048xbf16>, vector<8x2048xf32> -> vector<8x2048xf32>
    %6 = arith.addf %2, %5 : vector<8x2048xf32>
    %c0_8 = arith.constant 0 : index
    %c0_9 = arith.constant 0 : index
    %7 = vector.load %arg5[%c0_8, %c0_9] : memref<1x2048xf32, #tpu.memory_space<vmem>>, vector<1x2048xf32>
    %8 = vector.broadcast %7 : vector<1x2048xf32> to vector<8x2048xf32>
    %9 = arith.addf %6, %8 : vector<8x2048xf32>
    %10 = arith.negf %9 : vector<8x2048xf32>
    %11 = math.exp %10 : vector<8x2048xf32>
    %cst_10 = arith.constant 1.000000e+00 : f32
    %12 = vector.broadcast %cst_10 : f32 to vector<8x2048xf32>
    %13 = arith.addf %12, %11 : vector<8x2048xf32>
    %14 = arith.divf %12, %13 : vector<8x2048xf32>
    %c0_11 = arith.constant 0 : index
    %c0_12 = arith.constant 0 : index
    %15 = vector.load %arg6[%c0_11, %c0_12] : memref<1x2048xf32, #tpu.memory_space<vmem>>, vector<1x2048xf32>
    %16 = vector.broadcast %15 : vector<1x2048xf32> to vector<8x2048xf32>
    %17 = arith.mulf %14, %16 : vector<8x2048xf32>
    %cst_13 = arith.constant dense<0.000000e+00> : vector<8xf32>
    %18 = vector.multi_reduction <add>, %17, %cst_13 [1] : vector<8x2048xf32> to vector<8xf32>
    %19 = vector.shape_cast %18 : vector<8xf32> to vector<8x1xf32>
    %c0_14 = arith.constant 0 : index
    %c0_15 = arith.constant 0 : index
    %20 = memref.load %arg7[%c0_14, %c0_15] : memref<1x1xf32, #tpu.memory_space<smem>>
    %21 = vector.broadcast %20 : f32 to vector<8x1xf32>
    %22 = arith.addf %19, %21 : vector<8x1xf32>
    %23 = arith.negf %22 : vector<8x1xf32>
    %24 = math.exp %23 : vector<8x1xf32>
    %cst_16 = arith.constant 1.000000e+00 : f32
    %25 = vector.broadcast %cst_16 : f32 to vector<8x1xf32>
    %26 = arith.addf %25, %24 : vector<8x1xf32>
    %27 = arith.divf %25, %26 : vector<8x1xf32>
    %c0_17 = arith.constant 0 : index
    %c0_18 = arith.constant 0 : index
    %28 = vector.load %arg8[%c0_17, %c0_18] : memref<8x1xf32, #tpu.memory_space<vmem>>, vector<8x1xf32>
    tpu.vector_store %arg8[%c0_17, %c0_18], %27 {strides = array<i32>} : memref<8x1xf32, #tpu.memory_space<vmem>>, vector<8x1xf32>,
    return
  }
  func.func @transform_0(%arg0: i32) -> (i32, i32) {
    %c0_i32 = arith.constant 0 : i32
    %c0_i32_0 = arith.constant 0 : i32
    return %arg0, %c0_i32 : i32, i32
  }
  func.func @transform_1(%arg0: i32) -> (i32, i32) {
    %c0_i32 = arith.constant 0 : i32
    %c0_i32_0 = arith.constant 0 : i32
    return %arg0, %c0_i32 : i32, i32
  }
  func.func @transform_2(%arg0: i32) -> (i32, i32) {
    %c0_i32 = arith.constant 0 : i32
    %c0_i32_0 = arith.constant 0 : i32
    %c0_i32_1 = arith.constant 0 : i32
    return %c0_i32, %c0_i32_0 : i32, i32
  }
  func.func @transform_3(%arg0: i32) -> (i32, i32) {
    %c0_i32 = arith.constant 0 : i32
    %c0_i32_0 = arith.constant 0 : i32
    %c0_i32_1 = arith.constant 0 : i32
    return %c0_i32, %c0_i32_0 : i32, i32
  }
  func.func @transform_4(%arg0: i32) -> (i32, i32) {
    %c0_i32 = arith.constant 0 : i32
    %c0_i32_0 = arith.constant 0 : i32
    %c0_i32_1 = arith.constant 0 : i32
    return %c0_i32, %c0_i32_0 : i32, i32
  }
  func.func @transform_5(%arg0: i32) -> (i32, i32) {
    %c0_i32 = arith.constant 0 : i32
    %c0_i32_0 = arith.constant 0 : i32
    %c0_i32_1 = arith.constant 0 : i32
    return %c0_i32, %c0_i32_0 : i32, i32
  }
  func.func @transform_6(%arg0: i32) -> (i32, i32) {
    %c0_i32 = arith.constant 0 : i32
    %c0_i32_0 = arith.constant 0 : i32
    %c0_i32_1 = arith.constant 0 : i32
    return %c0_i32, %c0_i32_0 : i32, i32
  }
  func.func @transform_7(%arg0: i32) -> (i32, i32) {
    %c0_i32 = arith.constant 0 : i32
    %c0_i32_0 = arith.constant 0 : i32
    return %arg0, %c0_i32 : i32, i32
  }
}

</mosaic_0001>

<llo_original>
// kernel: tpu_custom_call.1
$region0: #{tpu_custom_call.1}
  #allocation0 [shape = 'u32[]', space=smem, size = 0x4, offset = 0x4, fixed_abs, tag = 'smem constant byte address 0x4 - core index']
  #allocation1 [shape = 'u32[144,128]{1,0:T(1,128)}', space=vmem, size = 0x12000, scoped, tag = 'internal scratch']
  #allocation2 [shape = 'f32[1,1]{1,0:T(1,128)S(6)}', space=smem, size = 0x200, scoped, tag = 'scoped memory for tpu_custom_call.1']
  %s0 = inlined_call_operand.hbm [shape: bf16[8,32], index: 0, kind: input, shape index: {}]
  %s1 = inlined_call_operand.hbm [shape: bf16[8,32], index: 1, kind: input, shape index: {}]
  %s2 = inlined_call_operand.hbm [shape: bf16[32,2048], index: 2, kind: input, shape index: {}]
  %s3 = inlined_call_operand.hbm [shape: bf16[32,2048], index: 3, kind: input, shape index: {}]
  %s4 = inlined_call_operand.vmem [shape: f32[1,2048], index: 4, kind: input, shape index: {}]
  %s5 = inlined_call_operand.hbm [shape: f32[1,2048], index: 5, kind: input, shape index: {}]
  %s6 = inlined_call_operand.<no memory space> [shape: f32[1,1], index: 6, kind: input, shape index: {}]
  %s7 = inlined_call_operand.vmem [shape: f32[8,1], index: 7, kind: output, shape index: {}]
  %s8 = sld [smem:[#allocation0]]
  $region58: #{tpu_custom_call.1} parent=0
    _
  %s10 = ssub.s32 1, %s8
  %s11 = scalar_select 0, %s10, %s8
  %12 = sst [smem:[#allocation2]] %s6
  $region1: #{tpu_custom_call.1} parent=0
    #allocation3 [shape = 'u8[2048]{0}', space=vmem, size = 0x800, scoped, tag = 'input window, operand 0, single buffered']
    #allocation4 [shape = 's32[1]{0}', space=sflag, size = 0x4, scoped, tag = 'scoped memory for tpu_custom_call.1']
    #allocation5 [shape = 'u8[2048]{0}', space=vmem, size = 0x800, scoped, tag = 'input window, operand 1, single buffered']
    #allocation6 [shape = 's32[1]{0}', space=sflag, size = 0x4, scoped, tag = 'scoped memory for tpu_custom_call.1']
    #allocation7 [shape = 'u8[131072]{0}', space=vmem, size = 0x20000, scoped, tag = 'input window, operand 2, single buffered']
    #allocation8 [shape = 'u8[131072]{0}', space=vmem, size = 0x20000, scoped, tag = 'input window, operand 3, single buffered']
    #allocation9 [shape = 's32[1]{0}', space=sflag, size = 0x4, scoped, tag = 'scoped memory for tpu_custom_call.1']
    #allocation10 [shape = 'u8[8192]{0}', space=vmem, size = 0x2000, scoped, tag = 'input window, operand 5, single buffered']
    %13 = vsyncpa [#allocation4], 0
    %14 = vsyncpa [#allocation6], 0
    %15 = vsyncpa [#allocation9], 0
    // Predicated region
    $region2: #{tpu_custom_call.1} parent=1 // pred_check
      _
    $region3: #{tpu_custom_call.1} parent=1 // pred_check_branch
      %17 = sbr.rel (0) target = $region5
    $region4: #{tpu_custom_call.1} parent=1 // pred_region
      %s19 = ssub.s32 64, 64
      %20 = vsyncadd [#allocation4], %s19
      %s22 = sshll.u32 [#allocation3], 4
      %s23 = int_to_ptr.vmem [resolvable:$true] %s22
      %25 = dma.hbm_to_vmem [thread:$0]  %s0, 64, %s23, [#allocation4]
    $region5: #{tpu_custom_call.1} parent=1 // pred_fallthru
      _
    // Predicated region
    $region6: #{tpu_custom_call.1} parent=1 // pred_check
      _
    $region7: #{tpu_custom_call.1} parent=1 // pred_check_branch
      %27 = sbr.rel (0) target = $region9
    $region8: #{tpu_custom_call.1} parent=1 // pred_region
      %s29 = ssub.s32 64, 64
      %30 = vsyncadd [#allocation6], %s29
      %s32 = sshll.u32 [#allocation5], 4
      %s33 = int_to_ptr.vmem [resolvable:$true] %s32
      %35 = dma.hbm_to_vmem [thread:$0]  %s1, 64, %s33, [#allocation6]
    $region9: #{tpu_custom_call.1} parent=1 // pred_fallthru
      _
    // Predicated region
    $region10: #{tpu_custom_call.1} parent=1 // pred_check
      _
    $region11: #{tpu_custom_call.1} parent=1 // pred_check_branch
      %37 = sbr.rel (0) target = $region13
    $region12: #{tpu_custom_call.1} parent=1 // pred_region
      %s39 = ssub.s32 4096, 4096
      %40 = vsyncadd [#allocation6], %s39
      %s41 = sshll.u32 [#allocation7], 4
      %s42 = int_to_ptr.vmem [resolvable:$true] %s41
      %47 = dma.hbm_to_vmem [thread:$0]  %s2, 4096, %s42, [#allocation6], 1024, 1024, 64
    $region13: #{tpu_custom_call.1} parent=1 // pred_fallthru
      _
    // Predicated region
    $region14: #{tpu_custom_call.1} parent=1 // pred_check
      _
    $region15: #{tpu_custom_call.1} parent=1 // pred_check_branch
      %49 = sbr.rel (0) target = $region17
    $region16: #{tpu_custom_call.1} parent=1 // pred_region
      %s51 = ssub.s32 4096, 4096
      %52 = vsyncadd [#allocation9], %s51
      %s53 = sshll.u32 [#allocation8], 4
      %s54 = int_to_ptr.vmem [resolvable:$true] %s53
      %59 = dma.hbm_to_vmem [thread:$0]  %s3, 4096, %s54, [#allocation9], 1024, 1024, 64
    $region17: #{tpu_custom_call.1} parent=1 // pred_fallthru
      _
    // Predicated region
    $region18: #{tpu_custom_call.1} parent=1 // pred_check
      _
    $region19: #{tpu_custom_call.1} parent=1 // pred_check_branch
      %61 = sbr.rel (0) target = $region21
    $region20: #{tpu_custom_call.1} parent=1 // pred_region
      _
    $region21: #{tpu_custom_call.1} parent=1 // pred_fallthru
      _
    // Predicated region
    $region22: #{tpu_custom_call.1} parent=1 // pred_check
      _
    $region23: #{tpu_custom_call.1} parent=1 // pred_check_branch
      %63 = sbr.rel (0) target = $region25
    $region24: #{tpu_custom_call.1} parent=1 // pred_region
      %s65 = ssub.s32 256, 256
      %66 = vsyncadd [#allocation9], %s65
      %s68 = sshll.u32 [#allocation10], 4
      %s69 = int_to_ptr.vmem [resolvable:$true] %s68
      %71 = dma.hbm_to_vmem [thread:$0]  %s5, 256, %s69, [#allocation9]
    $region25: #{tpu_custom_call.1} parent=1 // pred_fallthru
      _
    // Predicated region
    $region26: #{tpu_custom_call.1} parent=1 // pred_check
      _
    $region27: #{tpu_custom_call.1} parent=1 // pred_check_branch
      %73 = sbr.rel (0) target = $region29
    $region28: #{tpu_custom_call.1} parent=1 // pred_region
      _
    $region29: #{tpu_custom_call.1} parent=1 // pred_fallthru
      _
    // Predicated region
    $region30: #{tpu_custom_call.1} parent=1 // pred_check
      _
    $region31: #{tpu_custom_call.1} parent=1 // pred_check_branch
      %75 = sbr.rel (0) target = $region33
    $region32: #{tpu_custom_call.1} parent=1 // pred_region
      %76 = dma.done [#allocation4], 64
    $region33: #{tpu_custom_call.1} parent=1 // pred_fallthru
      _
    // Predicated region
    $region34: #{tpu_custom_call.1} parent=1 // pred_check
      _
    $region35: #{tpu_custom_call.1} parent=1 // pred_check_branch
      %78 = sbr.rel (0) target = $region37
    $region36: #{tpu_custom_call.1} parent=1 // pred_region
      %79 = dma.done [#allocation6], 64
    $region37: #{tpu_custom_call.1} parent=1 // pred_fallthru
      _
    // Predicated region
    $region38: #{tpu_custom_call.1} parent=1 // pred_check
      _
    $region39: #{tpu_custom_call.1} parent=1 // pred_check_branch
      %81 = sbr.rel (0) target = $region41
    $region40: #{tpu_custom_call.1} parent=1 // pred_region
      %82 = dma.done [#allocation6], 4096
    $region41: #{tpu_custom_call.1} parent=1 // pred_fallthru
      _
    // Predicated region
    $region42: #{tpu_custom_call.1} parent=1 // pred_check
      _
    $region43: #{tpu_custom_call.1} parent=1 // pred_check_branch
      %84 = sbr.rel (0) target = $region45
    $region44: #{tpu_custom_call.1} parent=1 // pred_region
      %85 = dma.done [#allocation9], 4096
    $region45: #{tpu_custom_call.1} parent=1 // pred_fallthru
      _
    // Predicated region
    $region46: #{tpu_custom_call.1} parent=1 // pred_check
      _
    $region47: #{tpu_custom_call.1} parent=1 // pred_check_branch
      %87 = sbr.rel (0) target = $region49
    $region48: #{tpu_custom_call.1} parent=1 // pred_region
      %88 = dma.done [#allocation9], 256
    $region49: #{tpu_custom_call.1} parent=1 // pred_fallthru
      _
    %v90 = vld [vmem:[#allocation3] sm:$0xf]
    %v91 = vld [vmem:[#allocation7] sm:$0xff]
    %v92 = vld [vmem:[#allocation7 + $0x8] sm:$0xff]
    %v93 = vld [vmem:[#allocation7 + $0x10] sm:$0xff]
    %v94 = vld [vmem:[#allocation7 + $0x18] sm:$0xff]
    %v95 = vld [vmem:[#allocation7 + $0x20] sm:$0xff]
    %v96 = vld [vmem:[#allocation7 + $0x28] sm:$0xff]
    %v97 = vld [vmem:[#allocation7 + $0x30] sm:$0xff]
    %v98 = vld [vmem:[#allocation7 + $0x38] sm:$0xff]
    %v99 = vld [vmem:[#allocation7 + $0x40] sm:$0xff]
    %v100 = vld [vmem:[#allocation7 + $0x48] sm:$0xff]
    %v101 = vld [vmem:[#allocation7 + $0x50] sm:$0xff]
    %v102 = vld [vmem:[#allocation7 + $0x58] sm:$0xff]
    %v103 = vld [vmem:[#allocation7 + $0x60] sm:$0xff]
    %v104 = vld [vmem:[#allocation7 + $0x68] sm:$0xff]
    %v105 = vld [vmem:[#allocation7 + $0x70] sm:$0xff]
    %v106 = vld [vmem:[#allocation7 + $0x78] sm:$0xff]
    %v107 = vld [vmem:[#allocation7 + $0x80] sm:$0xff]
    %v108 = vld [vmem:[#allocation7 + $0x88] sm:$0xff]
    %v109 = vld [vmem:[#allocation7 + $0x90] sm:$0xff]
    %v110 = vld [vmem:[#allocation7 + $0x98] sm:$0xff]
    %v111 = vld [vmem:[#allocation7 + $0xa0] sm:$0xff]
    %v112 = vld [vmem:[#allocation7 + $0xa8] sm:$0xff]
    %v113 = vld [vmem:[#allocation7 + $0xb0] sm:$0xff]
    %v114 = vld [vmem:[#allocation7 + $0xb8] sm:$0xff]
    %v115 = vld [vmem:[#allocation7 + $0xc0] sm:$0xff]
    %v116 = vld [vmem:[#allocation7 + $0xc8] sm:$0xff]
    %v117 = vld [vmem:[#allocation7 + $0xd0] sm:$0xff]
    %v118 = vld [vmem:[#allocation7 + $0xd8] sm:$0xff]
    %v119 = vld [vmem:[#allocation7 + $0xe0] sm:$0xff]
    %v120 = vld [vmem:[#allocation7 + $0xe8] sm:$0xff]
    %v121 = vld [vmem:[#allocation7 + $0xf0] sm:$0xff]
    %v122 = vld [vmem:[#allocation7 + $0xf8] sm:$0xff]
    %v123 = vld [vmem:[#allocation5] sm:$0xf]
    %v124 = vld [vmem:[#allocation8] sm:$0xff]
    %v125 = vld [vmem:[#allocation8 + $0x8] sm:$0xff]
    %v126 = vld [vmem:[#allocation8 + $0x10] sm:$0xff]
    %v127 = vld [vmem:[#allocation8 + $0x18] sm:$0xff]
    %v128 = vld [vmem:[#allocation8 + $0x20] sm:$0xff]
    %v129 = vld [vmem:[#allocation8 + $0x28] sm:$0xff]
    %v130 = vld [vmem:[#allocation8 + $0x30] sm:$0xff]
    %v131 = vld [vmem:[#allocation8 + $0x38] sm:$0xff]
    %v132 = vld [vmem:[#allocation8 + $0x40] sm:$0xff]
    %v133 = vld [vmem:[#allocation8 + $0x48] sm:$0xff]
    %v134 = vld [vmem:[#allocation8 + $0x50] sm:$0xff]
    %v135 = vld [vmem:[#allocation8 + $0x58] sm:$0xff]
    %v136 = vld [vmem:[#allocation8 + $0x60] sm:$0xff]
    %v137 = vld [vmem:[#allocation8 + $0x68] sm:$0xff]
    %v138 = vld [vmem:[#allocation8 + $0x70] sm:$0xff]
    %v139 = vld [vmem:[#allocation8 + $0x78] sm:$0xff]
    %v140 = vld [vmem:[#allocation8 + $0x80] sm:$0xff]
    %v141 = vld [vmem:[#allocation8 + $0x88] sm:$0xff]
    %v142 = vld [vmem:[#allocation8 + $0x90] sm:$0xff]
    %v143 = vld [vmem:[#allocation8 + $0x98] sm:$0xff]
    %v144 = vld [vmem:[#allocation8 + $0xa0] sm:$0xff]
    %v145 = vld [vmem:[#allocation8 + $0xa8] sm:$0xff]
    %v146 = vld [vmem:[#allocation8 + $0xb0] sm:$0xff]
    %v147 = vld [vmem:[#allocation8 + $0xb8] sm:$0xff]
    %v148 = vld [vmem:[#allocation8 + $0xc0] sm:$0xff]
    %v149 = vld [vmem:[#allocation8 + $0xc8] sm:$0xff]
    %v150 = vld [vmem:[#allocation8 + $0xd0] sm:$0xff]
    %v151 = vld [vmem:[#allocation8 + $0xd8] sm:$0xff]
    %v152 = vld [vmem:[#allocation8 + $0xe0] sm:$0xff]
    %v153 = vld [vmem:[#allocation8 + $0xe8] sm:$0xff]
    %v154 = vld [vmem:[#allocation8 + $0xf0] sm:$0xff]
    %v155 = vld [vmem:[#allocation8 + $0xf8] sm:$0xff]
    %v188 = vunpack.c.l.b16 %v124
    %v189 = vunpack.c.h.b16 %v124
    %v190 = vunpack.c.l.b16 %v125
    %v191 = vunpack.c.h.b16 %v125
    %v192 = vunpack.c.l.b16 %v126
    %v193 = vunpack.c.h.b16 %v126
    %v194 = vunpack.c.l.b16 %v127
    %v195 = vunpack.c.h.b16 %v127
    %v196 = vunpack.c.l.b16 %v128
    %v197 = vunpack.c.h.b16 %v128
    %v198 = vunpack.c.l.b16 %v129
    %v199 = vunpack.c.h.b16 %v129
    %v200 = vunpack.c.l.b16 %v130
    %v201 = vunpack.c.h.b16 %v130
    %v202 = vunpack.c.l.b16 %v131
    %v203 = vunpack.c.h.b16 %v131
    %v204 = vunpack.c.l.b16 %v132
    %v205 = vunpack.c.h.b16 %v132
    %v206 = vunpack.c.l.b16 %v133
    %v207 = vunpack.c.h.b16 %v133
    %v208 = vunpack.c.l.b16 %v134
    %v209 = vunpack.c.h.b16 %v134
    %v210 = vunpack.c.l.b16 %v135
    %v211 = vunpack.c.h.b16 %v135
    %v212 = vunpack.c.l.b16 %v136
    %v213 = vunpack.c.h.b16 %v136
    %v214 = vunpack.c.l.b16 %v137
    %v215 = vunpack.c.h.b16 %v137
    %v216 = vunpack.c.l.b16 %v138
    %v217 = vunpack.c.h.b16 %v138
    %v218 = vunpack.c.l.b16 %v139
    %v219 = vunpack.c.h.b16 %v139
    %v220 = vunpack.c.l.b16 %v140
    %v221 = vunpack.c.h.b16 %v140
    %v222 = vunpack.c.l.b16 %v141
    %v223 = vunpack.c.h.b16 %v141
    %v224 = vunpack.c.l.b16 %v142
    %v225 = vunpack.c.h.b16 %v142
    %v226 = vunpack.c.l.b16 %v143
    %v227 = vunpack.c.h.b16 %v143
    %v228 = vunpack.c.l.b16 %v144
    %v229 = vunpack.c.h.b16 %v144
    %v230 = vunpack.c.l.b16 %v145
    %v231 = vunpack.c.h.b16 %v145
    %v232 = vunpack.c.l.b16 %v146
    %v233 = vunpack.c.h.b16 %v146
    %v234 = vunpack.c.l.b16 %v147
    %v235 = vunpack.c.h.b16 %v147
    %v236 = vunpack.c.l.b16 %v148
    %v237 = vunpack.c.h.b16 %v148
    %v238 = vunpack.c.l.b16 %v149
    %v239 = vunpack.c.h.b16 %v149
    %v240 = vunpack.c.l.b16 %v150
    %v241 = vunpack.c.h.b16 %v150
    %v242 = vunpack.c.l.b16 %v151
    %v243 = vunpack.c.h.b16 %v151
    %v244 = vunpack.c.l.b16 %v152
    %v245 = vunpack.c.h.b16 %v152
    %v246 = vunpack.c.l.b16 %v153
    %v247 = vunpack.c.h.b16 %v153
    %v248 = vunpack.c.l.b16 %v154
    %v249 = vunpack.c.h.b16 %v154
    %v250 = vunpack.c.l.b16 %v155
    %v251 = vunpack.c.h.b16 %v155
    %v252 = vpack.c.b16 %v204, %v188
    %v253 = vpack.c.b16 %v205, %v189
    %v254 = vpack.c.b16 %v206, %v190
    %v255 = vpack.c.b16 %v207, %v191
    %v256 = vpack.c.b16 %v208, %v192
    %v257 = vpack.c.b16 %v209, %v193
    %v258 = vpack.c.b16 %v210, %v194
    %v259 = vpack.c.b16 %v211, %v195
    %v260 = vpack.c.b16 %v212, %v196
    %v261 = vpack.c.b16 %v213, %v197
    %v262 = vpack.c.b16 %v214, %v198
    %v263 = vpack.c.b16 %v215, %v199
    %v264 = vpack.c.b16 %v216, %v200
    %v265 = vpack.c.b16 %v217, %v201
    %v266 = vpack.c.b16 %v218, %v202
    %v267 = vpack.c.b16 %v219, %v203
    %v268 = vpack.c.b16 %v236, %v220
    %v269 = vpack.c.b16 %v237, %v221
    %v270 = vpack.c.b16 %v238, %v222
    %v271 = vpack.c.b16 %v239, %v223
    %v272 = vpack.c.b16 %v240, %v224
    %v273 = vpack.c.b16 %v241, %v225
    %v274 = vpack.c.b16 %v242, %v226
    %v275 = vpack.c.b16 %v243, %v227
    %v276 = vpack.c.b16 %v244, %v228
    %v277 = vpack.c.b16 %v245, %v229
    %v278 = vpack.c.b16 %v246, %v230
    %v279 = vpack.c.b16 %v247, %v231
    %v280 = vpack.c.b16 %v248, %v232
    %v281 = vpack.c.b16 %v249, %v233
    %v282 = vpack.c.b16 %v250, %v234
    %v283 = vpack.c.b16 %v251, %v235
    %vm316 = vcmask 261120
    %v318 = vsel %vm316, %v123, 0
    %320 = vmatprep.subr.bf16.mxu0 %v253
    %321 = vmatpush1.bf16.msra.mxu0 %v252
    %322 = vmatprep.subr.bf16.mxu0 %v269
    %323 = vmatpush1.bf16.msra.mxu0 %v268
    %324 = vmatprep.subr.bf16.mxu0 0
    %325 = vmatpush1.bf16.msra.mxu0 0
    %326 = vmatprep.subr.bf16.mxu0 0
    %327 = vmatpush1.bf16.msra.mxu0 0
    %328 = vmatprep.subr.bf16.mxu0 0
    %329 = vmatpush1.bf16.msra.mxu0 0
    %330 = vmatprep.subr.bf16.mxu0 0
    %331 = vmatpush1.bf16.msra.mxu0 0
    %332 = vmatprep.subr.bf16.mxu0 0
    %333 = vmatpush1.bf16.msra.mxu0 0
    %334 = vmatprep.subr.bf16.mxu0 0
    %335 = vmatpush1.bf16.msra.mxu0 0
    %336 = vmatprep.subr.bf16.mxu0 0
    %337 = vmatpush1.bf16.msra.mxu0 0
    %338 = vmatprep.subr.bf16.mxu0 0
    %339 = vmatpush1.bf16.msra.mxu0 0
    %340 = vmatprep.subr.bf16.mxu0 0
    %341 = vmatpush1.bf16.msra.mxu0 0
    %342 = vmatprep.subr.bf16.mxu0 0
    %343 = vmatpush1.bf16.msra.mxu0 0
    %344 = vmatprep.subr.bf16.mxu0 0
    %345 = vmatpush1.bf16.msra.mxu0 0
    %346 = vmatprep.subr.bf16.mxu0 0
    %347 = vmatpush1.bf16.msra.mxu0 0
    %348 = vmatprep.subr.bf16.mxu0 0
    %349 = vmatpush1.bf16.msra.mxu0 0
    %350 = vmatprep.subr.bf16.mxu0 0
    %351 = vmatpush1.bf16.msra.mxu0 0
    %352 = vmatprep.mubr.bf16.mxu0 0
    %353 = vmatmul.mubr.bf16.gmra.mrb[0].mxu0 %v318
    %v354 = vpop.f32.mrb[0].mxu0
    %v355 = vadd.f32 0.0, %v354
    %v356 = vpop.f32.mrb[0].mxu0
    %v357 = vadd.f32 0.0, %v356
    %v358 = vpop.f32.mrb[0].mxu0
    %v359 = vpop.f32.mrb[0].mxu0
    %360 = vdwg.mxu0
    %361 = vmatprep.subr.bf16.mxu0 %v255
    %362 = vmatpush1.bf16.msra.mxu0 %v254
    %363 = vmatprep.subr.bf16.mxu0 %v271
    %364 = vmatpush1.bf16.msra.mxu0 %v270
    %365 = vmatprep.subr.bf16.mxu0 0
    %366 = vmatpush1.bf16.msra.mxu0 0
    %367 = vmatprep.subr.bf16.mxu0 0
    %368 = vmatpush1.bf16.msra.mxu0 0
    %369 = vmatprep.subr.bf16.mxu0 0
    %370 = vmatpush1.bf16.msra.mxu0 0
    %371 = vmatprep.subr.bf16.mxu0 0
    %372 = vmatpush1.bf16.msra.mxu0 0
    %373 = vmatprep.subr.bf16.mxu0 0
    %374 = vmatpush1.bf16.msra.mxu0 0
    %375 = vmatprep.subr.bf16.mxu0 0
    %376 = vmatpush1.bf16.msra.mxu0 0
    %377 = vmatprep.subr.bf16.mxu0 0
    %378 = vmatpush1.bf16.msra.mxu0 0
    %379 = vmatprep.subr.bf16.mxu0 0
    %380 = vmatpush1.bf16.msra.mxu0 0
    %381 = vmatprep.subr.bf16.mxu0 0
    %382 = vmatpush1.bf16.msra.mxu0 0
    %383 = vmatprep.subr.bf16.mxu0 0
    %384 = vmatpush1.bf16.msra.mxu0 0
    %385 = vmatprep.subr.bf16.mxu0 0
    %386 = vmatpush1.bf16.msra.mxu0 0
    %387 = vmatprep.subr.bf16.mxu0 0
    %388 = vmatpush1.bf16.msra.mxu0 0
    %389 = vmatprep.subr.bf16.mxu0 0
    %390 = vmatpush1.bf16.msra.mxu0 0
    %391 = vmatprep.subr.bf16.mxu0 0
    %392 = vmatpush1.bf16.msra.mxu0 0
    %393 = vmatprep.mubr.bf16.mxu0 0
    %394 = vmatmul.mubr.bf16.gmra.mrb[0].mxu0 %v318
    %v395 = vpop.f32.mrb[0].mxu0
    %v396 = vadd.f32 0.0, %v395
    %v397 = vpop.f32.mrb[0].mxu0
    %v398 = vadd.f32 0.0, %v397
    %v399 = vpop.f32.mrb[0].mxu0
    %v400 = vpop.f32.mrb[0].mxu0
    %401 = vdwg.mxu0
    %402 = vmatprep.subr.bf16.mxu0 %v257
    %403 = vmatpush1.bf16.msra.mxu0 %v256
    %404 = vmatprep.subr.bf16.mxu0 %v273
    %405 = vmatpush1.bf16.msra.mxu0 %v272
    %406 = vmatprep.subr.bf16.mxu0 0
    %407 = vmatpush1.bf16.msra.mxu0 0
    %408 = vmatprep.subr.bf16.mxu0 0
    %409 = vmatpush1.bf16.msra.mxu0 0
    %410 = vmatprep.subr.bf16.mxu0 0
    %411 = vmatpush1.bf16.msra.mxu0 0
    %412 = vmatprep.subr.bf16.mxu0 0
    %413 = vmatpush1.bf16.msra.mxu0 0
    %414 = vmatprep.subr.bf16.mxu0 0
    %415 = vmatpush1.bf16.msra.mxu0 0
    %416 = vmatprep.subr.bf16.mxu0 0
    %417 = vmatpush1.bf16.msra.mxu0 0
    %418 = vmatprep.subr.bf16.mxu0 0
    %419 = vmatpush1.bf16.msra.mxu0 0
    %420 = vmatprep.subr.bf16.mxu0 0
    %421 = vmatpush1.bf16.msra.mxu0 0
    %422 = vmatprep.subr.bf16.mxu0 0
    %423 = vmatpush1.bf16.msra.mxu0 0
    %424 = vmatprep.subr.bf16.mxu0 0
    %425 = vmatpush1.bf16.msra.mxu0 0
    %426 = vmatprep.subr.bf16.mxu0 0
    %427 = vmatpush1.bf16.msra.mxu0 0
    %428 = vmatprep.subr.bf16.mxu0 0
    %429 = vmatpush1.bf16.msra.mxu0 0
    %430 = vmatprep.subr.bf16.mxu0 0
    %431 = vmatpush1.bf16.msra.mxu0 0
    %432 = vmatprep.subr.bf16.mxu0 0
    %433 = vmatpush1.bf16.msra.mxu0 0
    %434 = vmatprep.mubr.bf16.mxu0 0
    %435 = vmatmul.mubr.bf16.gmra.mrb[0].mxu0 %v318
    %v436 = vpop.f32.mrb[0].mxu0
    %v437 = vadd.f32 0.0, %v436
    %v438 = vpop.f32.mrb[0].mxu0
    %v439 = vadd.f32 0.0, %v438
    %v440 = vpop.f32.mrb[0].mxu0
    %v441 = vpop.f32.mrb[0].mxu0
    %442 = vdwg.mxu0
    %443 = vmatprep.subr.bf16.mxu0 %v259
    %444 = vmatpush1.bf16.msra.mxu0 %v258
    %445 = vmatprep.subr.bf16.mxu0 %v275
    %446 = vmatpush1.bf16.msra.mxu0 %v274
    %447 = vmatprep.subr.bf16.mxu0 0
    %448 = vmatpush1.bf16.msra.mxu0 0
    %449 = vmatprep.subr.bf16.mxu0 0
    %450 = vmatpush1.bf16.msra.mxu0 0
    %451 = vmatprep.subr.bf16.mxu0 0
    %452 = vmatpush1.bf16.msra.mxu0 0
    %453 = vmatprep.subr.bf16.mxu0 0
    %454 = vmatpush1.bf16.msra.mxu0 0
    %455 = vmatprep.subr.bf16.mxu0 0
    %456 = vmatpush1.bf16.msra.mxu0 0
    %457 = vmatprep.subr.bf16.mxu0 0
    %458 = vmatpush1.bf16.msra.mxu0 0
    %459 = vmatprep.subr.bf16.mxu0 0
    %460 = vmatpush1.bf16.msra.mxu0 0
    %461 = vmatprep.subr.bf16.mxu0 0
    %462 = vmatpush1.bf16.msra.mxu0 0
    %463 = vmatprep.subr.bf16.mxu0 0
    %464 = vmatpush1.bf16.msra.mxu0 0
    %465 = vmatprep.subr.bf16.mxu0 0
    %466 = vmatpush1.bf16.msra.mxu0 0
    %467 = vmatprep.subr.bf16.mxu0 0
    %468 = vmatpush1.bf16.msra.mxu0 0
    %469 = vmatprep.subr.bf16.mxu0 0
    %470 = vmatpush1.bf16.msra.mxu0 0
    %471 = vmatprep.subr.bf16.mxu0 0
    %472 = vmatpush1.bf16.msra.mxu0 0
    %473 = vmatprep.subr.bf16.mxu0 0
    %474 = vmatpush1.bf16.msra.mxu0 0
    %475 = vmatprep.mubr.bf16.mxu0 0
    %476 = vmatmul.mubr.bf16.gmra.mrb[0].mxu0 %v318
    %v477 = vpop.f32.mrb[0].mxu0
    %v478 = vadd.f32 0.0, %v477
    %v479 = vpop.f32.mrb[0].mxu0
    %v480 = vadd.f32 0.0, %v479
    %v481 = vpop.f32.mrb[0].mxu0
    %v482 = vpop.f32.mrb[0].mxu0
    %483 = vdwg.mxu0
    %484 = vmatprep.subr.bf16.mxu0 %v261
    %485 = vmatpush1.bf16.msra.mxu0 %v260
    %486 = vmatprep.subr.bf16.mxu0 %v277
    %487 = vmatpush1.bf16.msra.mxu0 %v276
    %488 = vmatprep.subr.bf16.mxu0 0
    %489 = vmatpush1.bf16.msra.mxu0 0
    %490 = vmatprep.subr.bf16.mxu0 0
    %491 = vmatpush1.bf16.msra.mxu0 0
    %492 = vmatprep.subr.bf16.mxu0 0
    %493 = vmatpush1.bf16.msra.mxu0 0
    %494 = vmatprep.subr.bf16.mxu0 0
    %495 = vmatpush1.bf16.msra.mxu0 0
    %496 = vmatprep.subr.bf16.mxu0 0
    %497 = vmatpush1.bf16.msra.mxu0 0
    %498 = vmatprep.subr.bf16.mxu0 0
    %499 = vmatpush1.bf16.msra.mxu0 0
    %500 = vmatprep.subr.bf16.mxu0 0
    %501 = vmatpush1.bf16.msra.mxu0 0
    %502 = vmatprep.subr.bf16.mxu0 0
    %503 = vmatpush1.bf16.msra.mxu0 0
    %504 = vmatprep.subr.bf16.mxu0 0
    %505 = vmatpush1.bf16.msra.mxu0 0
    %506 = vmatprep.subr.bf16.mxu0 0
    %507 = vmatpush1.bf16.msra.mxu0 0
    %508 = vmatprep.subr.bf16.mxu0 0
    %509 = vmatpush1.bf16.msra.mxu0 0
    %510 = vmatprep.subr.bf16.mxu0 0
    %511 = vmatpush1.bf16.msra.mxu0 0
    %512 = vmatprep.subr.bf16.mxu0 0
    %513 = vmatpush1.bf16.msra.mxu0 0
    %514 = vmatprep.subr.bf16.mxu0 0
    %515 = vmatpush1.bf16.msra.mxu0 0
    %516 = vmatprep.mubr.bf16.mxu0 0
    %517 = vmatmul.mubr.bf16.gmra.mrb[0].mxu0 %v318
    %v518 = vpop.f32.mrb[0].mxu0
    %v519 = vadd.f32 0.0, %v518
    %v520 = vpop.f32.mrb[0].mxu0
    %v521 = vadd.f32 0.0, %v520
    %v522 = vpop.f32.mrb[0].mxu0
    %v523 = vpop.f32.mrb[0].mxu0
    %524 = vdwg.mxu0
    %525 = vmatprep.subr.bf16.mxu0 %v263
    %526 = vmatpush1.bf16.msra.mxu0 %v262
    %527 = vmatprep.subr.bf16.mxu0 %v279
    %528 = vmatpush1.bf16.msra.mxu0 %v278
    %529 = vmatprep.subr.bf16.mxu0 0
    %530 = vmatpush1.bf16.msra.mxu0 0
    %531 = vmatprep.subr.bf16.mxu0 0
    %532 = vmatpush1.bf16.msra.mxu0 0
    %533 = vmatprep.subr.bf16.mxu0 0
    %534 = vmatpush1.bf16.msra.mxu0 0
    %535 = vmatprep.subr.bf16.mxu0 0
    %536 = vmatpush1.bf16.msra.mxu0 0
    %537 = vmatprep.subr.bf16.mxu0 0
    %538 = vmatpush1.bf16.msra.mxu0 0
    %539 = vmatprep.subr.bf16.mxu0 0
    %540 = vmatpush1.bf16.msra.mxu0 0
    %541 = vmatprep.subr.bf16.mxu0 0
    %542 = vmatpush1.bf16.msra.mxu0 0
    %543 = vmatprep.subr.bf16.mxu0 0
    %544 = vmatpush1.bf16.msra.mxu0 0
    %545 = vmatprep.subr.bf16.mxu0 0
    %546 = vmatpush1.bf16.msra.mxu0 0
    %547 = vmatprep.subr.bf16.mxu0 0
    %548 = vmatpush1.bf16.msra.mxu0 0
    %549 = vmatprep.subr.bf16.mxu0 0
    %550 = vmatpush1.bf16.msra.mxu0 0
    %551 = vmatprep.subr.bf16.mxu0 0
    %552 = vmatpush1.bf16.msra.mxu0 0
    %553 = vmatprep.subr.bf16.mxu0 0
    %554 = vmatpush1.bf16.msra.mxu0 0
    %555 = vmatprep.subr.bf16.mxu0 0
    %556 = vmatpush1.bf16.msra.mxu0 0
    %557 = vmatprep.mubr.bf16.mxu0 0
    %558 = vmatmul.mubr.bf16.gmra.mrb[0].mxu0 %v318
    %v559 = vpop.f32.mrb[0].mxu0
    %v560 = vadd.f32 0.0, %v559
    %v561 = vpop.f32.mrb[0].mxu0
    %v562 = vadd.f32 0.0, %v561
    %v563 = vpop.f32.mrb[0].mxu0
    %v564 = vpop.f32.mrb[0].mxu0
    %565 = vdwg.mxu0
    %566 = vmatprep.subr.bf16.mxu0 %v265
    %567 = vmatpush1.bf16.msra.mxu0 %v264
    %568 = vmatprep.subr.bf16.mxu0 %v281
    %569 = vmatpush1.bf16.msra.mxu0 %v280
    %570 = vmatprep.subr.bf16.mxu0 0
    %571 = vmatpush1.bf16.msra.mxu0 0
    %572 = vmatprep.subr.bf16.mxu0 0
    %573 = vmatpush1.bf16.msra.mxu0 0
    %574 = vmatprep.subr.bf16.mxu0 0
    %575 = vmatpush1.bf16.msra.mxu0 0
    %576 = vmatprep.subr.bf16.mxu0 0
    %577 = vmatpush1.bf16.msra.mxu0 0
    %578 = vmatprep.subr.bf16.mxu0 0
    %579 = vmatpush1.bf16.msra.mxu0 0
    %580 = vmatprep.subr.bf16.mxu0 0
    %581 = vmatpush1.bf16.msra.mxu0 0
    %582 = vmatprep.subr.bf16.mxu0 0
    %583 = vmatpush1.bf16.msra.mxu0 0
    %584 = vmatprep.subr.bf16.mxu0 0
    %585 = vmatpush1.bf16.msra.mxu0 0
    %586 = vmatprep.subr.bf16.mxu0 0
    %587 = vmatpush1.bf16.msra.mxu0 0
    %588 = vmatprep.subr.bf16.mxu0 0
    %589 = vmatpush1.bf16.msra.mxu0 0
    %590 = vmatprep.subr.bf16.mxu0 0
    %591 = vmatpush1.bf16.msra.mxu0 0
    %592 = vmatprep.subr.bf16.mxu0 0
    %593 = vmatpush1.bf16.msra.mxu0 0
    %594 = vmatprep.subr.bf16.mxu0 0
    %595 = vmatpush1.bf16.msra.mxu0 0
    %596 = vmatprep.subr.bf16.mxu0 0
    %597 = vmatpush1.bf16.msra.mxu0 0
    %598 = vmatprep.mubr.bf16.mxu0 0
    %599 = vmatmul.mubr.bf16.gmra.mrb[0].mxu0 %v318
    %v600 = vpop.f32.mrb[0].mxu0
    %v601 = vadd.f32 0.0, %v600
    %v602 = vpop.f32.mrb[0].mxu0
    %v603 = vadd.f32 0.0, %v602
    %v604 = vpop.f32.mrb[0].mxu0
    %v605 = vpop.f32.mrb[0].mxu0
    %606 = vdwg.mxu0
    %607 = vmatprep.subr.bf16.mxu0 %v267
    %608 = vmatpush1.bf16.msra.mxu0 %v266
    %609 = vmatprep.subr.bf16.mxu0 %v283
    %610 = vmatpush1.bf16.msra.mxu0 %v282
    %611 = vmatprep.subr.bf16.mxu0 0
    %612 = vmatpush1.bf16.msra.mxu0 0
    %613 = vmatprep.subr.bf16.mxu0 0
    %614 = vmatpush1.bf16.msra.mxu0 0
    %615 = vmatprep.subr.bf16.mxu0 0
    %616 = vmatpush1.bf16.msra.mxu0 0
    %617 = vmatprep.subr.bf16.mxu0 0
    %618 = vmatpush1.bf16.msra.mxu0 0
    %619 = vmatprep.subr.bf16.mxu0 0
    %620 = vmatpush1.bf16.msra.mxu0 0
    %621 = vmatprep.subr.bf16.mxu0 0
    %622 = vmatpush1.bf16.msra.mxu0 0
    %623 = vmatprep.subr.bf16.mxu0 0
    %624 = vmatpush1.bf16.msra.mxu0 0
    %625 = vmatprep.subr.bf16.mxu0 0
    %626 = vmatpush1.bf16.msra.mxu0 0
    %627 = vmatprep.subr.bf16.mxu0 0
    %628 = vmatpush1.bf16.msra.mxu0 0
    %629 = vmatprep.subr.bf16.mxu0 0
    %630 = vmatpush1.bf16.msra.mxu0 0
    %631 = vmatprep.subr.bf16.mxu0 0
    %632 = vmatpush1.bf16.msra.mxu0 0
    %633 = vmatprep.subr.bf16.mxu0 0
    %634 = vmatpush1.bf16.msra.mxu0 0
    %635 = vmatprep.subr.bf16.mxu0 0
    %636 = vmatpush1.bf16.msra.mxu0 0
    %637 = vmatprep.subr.bf16.mxu0 0
    %638 = vmatpush1.bf16.msra.mxu0 0
    %639 = vmatprep.mubr.bf16.mxu0 0
    %640 = vmatmul.mubr.bf16.gmra.mrb[0].mxu0 %v318
    %v641 = vpop.f32.mrb[0].mxu0
    %v642 = vadd.f32 0.0, %v641
    %v643 = vpop.f32.mrb[0].mxu0
    %v644 = vadd.f32 0.0, %v643
    %v645 = vpop.f32.mrb[0].mxu0
    %v646 = vpop.f32.mrb[0].mxu0
    %647 = vdwg.mxu0
    %v680 = vunpack.c.l.b16 %v91
    %v681 = vunpack.c.h.b16 %v91
    %v682 = vunpack.c.l.b16 %v92
    %v683 = vunpack.c.h.b16 %v92
    %v684 = vunpack.c.l.b16 %v93
    %v685 = vunpack.c.h.b16 %v93
    %v686 = vunpack.c.l.b16 %v94
    %v687 = vunpack.c.h.b16 %v94
    %v688 = vunpack.c.l.b16 %v95
    %v689 = vunpack.c.h.b16 %v95
    %v690 = vunpack.c.l.b16 %v96
    %v691 = vunpack.c.h.b16 %v96
    %v692 = vunpack.c.l.b16 %v97
    %v693 = vunpack.c.h.b16 %v97
    %v694 = vunpack.c.l.b16 %v98
    %v695 = vunpack.c.h.b16 %v98
    %v696 = vunpack.c.l.b16 %v99
    %v697 = vunpack.c.h.b16 %v99
    %v698 = vunpack.c.l.b16 %v100
    %v699 = vunpack.c.h.b16 %v100
    %v700 = vunpack.c.l.b16 %v101
    %v701 = vunpack.c.h.b16 %v101
    %v702 = vunpack.c.l.b16 %v102
    %v703 = vunpack.c.h.b16 %v102
    %v704 = vunpack.c.l.b16 %v103
    %v705 = vunpack.c.h.b16 %v103
    %v706 = vunpack.c.l.b16 %v104
    %v707 = vunpack.c.h.b16 %v104
    %v708 = vunpack.c.l.b16 %v105
    %v709 = vunpack.c.h.b16 %v105
    %v710 = vunpack.c.l.b16 %v106
    %v711 = vunpack.c.h.b16 %v106
    %v712 = vunpack.c.l.b16 %v107
    %v713 = vunpack.c.h.b16 %v107
    %v714 = vunpack.c.l.b16 %v108
    %v715 = vunpack.c.h.b16 %v108
    %v716 = vunpack.c.l.b16 %v109
    %v717 = vunpack.c.h.b16 %v109
    %v718 = vunpack.c.l.b16 %v110
    %v719 = vunpack.c.h.b16 %v110
    %v720 = vunpack.c.l.b16 %v111
    %v721 = vunpack.c.h.b16 %v111
    %v722 = vunpack.c.l.b16 %v112
    %v723 = vunpack.c.h.b16 %v112
    %v724 = vunpack.c.l.b16 %v113
    %v725 = vunpack.c.h.b16 %v113
    %v726 = vunpack.c.l.b16 %v114
    %v727 = vunpack.c.h.b16 %v114
    %v728 = vunpack.c.l.b16 %v115
    %v729 = vunpack.c.h.b16 %v115
    %v730 = vunpack.c.l.b16 %v116
    %v731 = vunpack.c.h.b16 %v116
    %v732 = vunpack.c.l.b16 %v117
    %v733 = vunpack.c.h.b16 %v117
    %v734 = vunpack.c.l.b16 %v118
    %v735 = vunpack.c.h.b16 %v118
    %v736 = vunpack.c.l.b16 %v119
    %v737 = vunpack.c.h.b16 %v119
    %v738 = vunpack.c.l.b16 %v120
    %v739 = vunpack.c.h.b16 %v120
    %v740 = vunpack.c.l.b16 %v121
    %v741 = vunpack.c.h.b16 %v121
    %v742 = vunpack.c.l.b16 %v122
    %v743 = vunpack.c.h.b16 %v122
    %v744 = vpack.c.b16 %v696, %v680
    %v745 = vpack.c.b16 %v697, %v681
    %v746 = vpack.c.b16 %v698, %v682
    %v747 = vpack.c.b16 %v699, %v683
    %v748 = vpack.c.b16 %v700, %v684
    %v749 = vpack.c.b16 %v701, %v685
    %v750 = vpack.c.b16 %v702, %v686
    %v751 = vpack.c.b16 %v703, %v687
    %v752 = vpack.c.b16 %v704, %v688
    %v753 = vpack.c.b16 %v705, %v689
    %v754 = vpack.c.b16 %v706, %v690
    %v755 = vpack.c.b16 %v707, %v691
    %v756 = vpack.c.b16 %v708, %v692
    %v757 = vpack.c.b16 %v709, %v693
    %v758 = vpack.c.b16 %v710, %v694
    %v759 = vpack.c.b16 %v711, %v695
    %v760 = vpack.c.b16 %v728, %v712
    %v761 = vpack.c.b16 %v729, %v713
    %v762 = vpack.c.b16 %v730, %v714
    %v763 = vpack.c.b16 %v731, %v715
    %v764 = vpack.c.b16 %v732, %v716
    %v765 = vpack.c.b16 %v733, %v717
    %v766 = vpack.c.b16 %v734, %v718
    %v767 = vpack.c.b16 %v735, %v719
    %v768 = vpack.c.b16 %v736, %v720
    %v769 = vpack.c.b16 %v737, %v721
    %v770 = vpack.c.b16 %v738, %v722
    %v771 = vpack.c.b16 %v739, %v723
    %v772 = vpack.c.b16 %v740, %v724
    %v773 = vpack.c.b16 %v741, %v725
    %v774 = vpack.c.b16 %v742, %v726
    %v775 = vpack.c.b16 %v743, %v727
    %v809 = vsel %vm316, %v90, 0
    %811 = vmatprep.subr.bf16.mxu0 %v745
    %812 = vmatpush1.bf16.msra.mxu0 %v744
    %813 = vmatprep.subr.bf16.mxu0 %v761
    %814 = vmatpush1.bf16.msra.mxu0 %v760
    %815 = vmatprep.subr.bf16.mxu0 0
    %816 = vmatpush1.bf16.msra.mxu0 0
    %817 = vmatprep.subr.bf16.mxu0 0
    %818 = vmatpush1.bf16.msra.mxu0 0
    %819 = vmatprep.subr.bf16.mxu0 0
    %820 = vmatpush1.bf16.msra.mxu0 0
    %821 = vmatprep.subr.bf16.mxu0 0
    %822 = vmatpush1.bf16.msra.mxu0 0
    %823 = vmatprep.subr.bf16.mxu0 0
    %824 = vmatpush1.bf16.msra.mxu0 0
    %825 = vmatprep.subr.bf16.mxu0 0
    %826 = vmatpush1.bf16.msra.mxu0 0
    %827 = vmatprep.subr.bf16.mxu0 0
    %828 = vmatpush1.bf16.msra.mxu0 0
    %829 = vmatprep.subr.bf16.mxu0 0
    %830 = vmatpush1.bf16.msra.mxu0 0
    %831 = vmatprep.subr.bf16.mxu0 0
    %832 = vmatpush1.bf16.msra.mxu0 0
    %833 = vmatprep.subr.bf16.mxu0 0
    %834 = vmatpush1.bf16.msra.mxu0 0
    %835 = vmatprep.subr.bf16.mxu0 0
    %836 = vmatpush1.bf16.msra.mxu0 0
    %837 = vmatprep.subr.bf16.mxu0 0
    %838 = vmatpush1.bf16.msra.mxu0 0
    %839 = vmatprep.subr.bf16.mxu0 0
    %840 = vmatpush1.bf16.msra.mxu0 0
    %841 = vmatprep.subr.bf16.mxu0 0
    %842 = vmatpush1.bf16.msra.mxu0 0
    %843 = vmatprep.mubr.bf16.mxu0 0
    %844 = vmatmul.mubr.bf16.gmra.mrb[0].mxu0 %v809
    %v845 = vpop.f32.mrb[0].mxu0
    %v846 = vadd.f32 %v355, %v845
    %v847 = vpop.f32.mrb[0].mxu0
    %v848 = vadd.f32 %v357, %v847
    %v849 = vpop.f32.mrb[0].mxu0
    %v850 = vpop.f32.mrb[0].mxu0
    %851 = vdwg.mxu0
    %852 = vmatprep.subr.bf16.mxu0 %v747
    %853 = vmatpush1.bf16.msra.mxu0 %v746
    %854 = vmatprep.subr.bf16.mxu0 %v763
    %855 = vmatpush1.bf16.msra.mxu0 %v762
    %856 = vmatprep.subr.bf16.mxu0 0
    %857 = vmatpush1.bf16.msra.mxu0 0
    %858 = vmatprep.subr.bf16.mxu0 0
    %859 = vmatpush1.bf16.msra.mxu0 0
    %860 = vmatprep.subr.bf16.mxu0 0
    %861 = vmatpush1.bf16.msra.mxu0 0
    %862 = vmatprep.subr.bf16.mxu0 0
    %863 = vmatpush1.bf16.msra.mxu0 0
    %864 = vmatprep.subr.bf16.mxu0 0
    %865 = vmatpush1.bf16.msra.mxu0 0
    %866 = vmatprep.subr.bf16.mxu0 0
    %867 = vmatpush1.bf16.msra.mxu0 0
    %868 = vmatprep.subr.bf16.mxu0 0
    %869 = vmatpush1.bf16.msra.mxu0 0
    %870 = vmatprep.subr.bf16.mxu0 0
    %871 = vmatpush1.bf16.msra.mxu0 0
    %872 = vmatprep.subr.bf16.mxu0 0
    %873 = vmatpush1.bf16.msra.mxu0 0
    %874 = vmatprep.subr.bf16.mxu0 0
    %875 = vmatpush1.bf16.msra.mxu0 0
    %876 = vmatprep.subr.bf16.mxu0 0
    %877 = vmatpush1.bf16.msra.mxu0 0
    %878 = vmatprep.subr.bf16.mxu0 0
    %879 = vmatpush1.bf16.msra.mxu0 0
    %880 = vmatprep.subr.bf16.mxu0 0
    %881 = vmatpush1.bf16.msra.mxu0 0
    %882 = vmatprep.subr.bf16.mxu0 0
    %883 = vmatpush1.bf16.msra.mxu0 0
    %884 = vmatprep.mubr.bf16.mxu0 0
    %885 = vmatmul.mubr.bf16.gmra.mrb[0].mxu0 %v809
    %v886 = vpop.f32.mrb[0].mxu0
    %v887 = vadd.f32 %v396, %v886
    %v888 = vpop.f32.mrb[0].mxu0
    %v889 = vadd.f32 %v398, %v888
    %v890 = vpop.f32.mrb[0].mxu0
    %v891 = vpop.f32.mrb[0].mxu0
    %892 = vdwg.mxu0
    %893 = vmatprep.subr.bf16.mxu0 %v749
    %894 = vmatpush1.bf16.msra.mxu0 %v748
    %895 = vmatprep.subr.bf16.mxu0 %v765
    %896 = vmatpush1.bf16.msra.mxu0 %v764
    %897 = vmatprep.subr.bf16.mxu0 0
    %898 = vmatpush1.bf16.msra.mxu0 0
    %899 = vmatprep.subr.bf16.mxu0 0
    %900 = vmatpush1.bf16.msra.mxu0 0
    %901 = vmatprep.subr.bf16.mxu0 0
    %902 = vmatpush1.bf16.msra.mxu0 0
    %903 = vmatprep.subr.bf16.mxu0 0
    %904 = vmatpush1.bf16.msra.mxu0 0
    %905 = vmatprep.subr.bf16.mxu0 0
    %906 = vmatpush1.bf16.msra.mxu0 0
    %907 = vmatprep.subr.bf16.mxu0 0
    %908 = vmatpush1.bf16.msra.mxu0 0
    %909 = vmatprep.subr.bf16.mxu0 0
    %910 = vmatpush1.bf16.msra.mxu0 0
    %911 = vmatprep.subr.bf16.mxu0 0
    %912 = vmatpush1.bf16.msra.mxu0 0
    %913 = vmatprep.subr.bf16.mxu0 0
    %914 = vmatpush1.bf16.msra.mxu0 0
    %915 = vmatprep.subr.bf16.mxu0 0
    %916 = vmatpush1.bf16.msra.mxu0 0
    %917 = vmatprep.subr.bf16.mxu0 0
    %918 = vmatpush1.bf16.msra.mxu0 0
    %919 = vmatprep.subr.bf16.mxu0 0
    %920 = vmatpush1.bf16.msra.mxu0 0
    %921 = vmatprep.subr.bf16.mxu0 0
    %922 = vmatpush1.bf16.msra.mxu0 0
    %923 = vmatprep.subr.bf16.mxu0 0
    %924 = vmatpush1.bf16.msra.mxu0 0
    %925 = vmatprep.mubr.bf16.mxu0 0
    %926 = vmatmul.mubr.bf16.gmra.mrb[0].mxu0 %v809
    %v927 = vpop.f32.mrb[0].mxu0
    %v928 = vadd.f32 %v437, %v927
    %v929 = vpop.f32.mrb[0].mxu0
    %v930 = vadd.f32 %v439, %v929
    %v931 = vpop.f32.mrb[0].mxu0
    %v932 = vpop.f32.mrb[0].mxu0
    %933 = vdwg.mxu0
    %934 = vmatprep.subr.bf16.mxu0 %v751
    %935 = vmatpush1.bf16.msra.mxu0 %v750
    %936 = vmatprep.subr.bf16.mxu0 %v767
    %937 = vmatpush1.bf16.msra.mxu0 %v766
    %938 = vmatprep.subr.bf16.mxu0 0
    %939 = vmatpush1.bf16.msra.mxu0 0
    %940 = vmatprep.subr.bf16.mxu0 0
    %941 = vmatpush1.bf16.msra.mxu0 0
    %942 = vmatprep.subr.bf16.mxu0 0
    %943 = vmatpush1.bf16.msra.mxu0 0
    %944 = vmatprep.subr.bf16.mxu0 0
    %945 = vmatpush1.bf16.msra.mxu0 0
    %946 = vmatprep.subr.bf16.mxu0 0
    %947 = vmatpush1.bf16.msra.mxu0 0
    %948 = vmatprep.subr.bf16.mxu0 0
    %949 = vmatpush1.bf16.msra.mxu0 0
    %950 = vmatprep.subr.bf16.mxu0 0
    %951 = vmatpush1.bf16.msra.mxu0 0
    %952 = vmatprep.subr.bf16.mxu0 0
    %953 = vmatpush1.bf16.msra.mxu0 0
    %954 = vmatprep.subr.bf16.mxu0 0
    %955 = vmatpush1.bf16.msra.mxu0 0
    %956 = vmatprep.subr.bf16.mxu0 0
    %957 = vmatpush1.bf16.msra.mxu0 0
    %958 = vmatprep.subr.bf16.mxu0 0
    %959 = vmatpush1.bf16.msra.mxu0 0
    %960 = vmatprep.subr.bf16.mxu0 0
    %961 = vmatpush1.bf16.msra.mxu0 0
    %962 = vmatprep.subr.bf16.mxu0 0
    %963 = vmatpush1.bf16.msra.mxu0 0
    %964 = vmatprep.subr.bf16.mxu0 0
    %965 = vmatpush1.bf16.msra.mxu0 0
    %966 = vmatprep.mubr.bf16.mxu0 0
    %967 = vmatmul.mubr.bf16.gmra.mrb[0].mxu0 %v809
    %v968 = vpop.f32.mrb[0].mxu0
    %v969 = vadd.f32 %v478, %v968
    %v970 = vpop.f32.mrb[0].mxu0
    %v971 = vadd.f32 %v480, %v970
    %v972 = vpop.f32.mrb[0].mxu0
    %v973 = vpop.f32.mrb[0].mxu0
    %974 = vdwg.mxu0
    %975 = vmatprep.subr.bf16.mxu0 %v753
    %976 = vmatpush1.bf16.msra.mxu0 %v752
    %977 = vmatprep.subr.bf16.mxu0 %v769
    %978 = vmatpush1.bf16.msra.mxu0 %v768
    %979 = vmatprep.subr.bf16.mxu0 0
    %980 = vmatpush1.bf16.msra.mxu0 0
    %981 = vmatprep.subr.bf16.mxu0 0
    %982 = vmatpush1.bf16.msra.mxu0 0
    %983 = vmatprep.subr.bf16.mxu0 0
    %984 = vmatpush1.bf16.msra.mxu0 0
    %985 = vmatprep.subr.bf16.mxu0 0
    %986 = vmatpush1.bf16.msra.mxu0 0
    %987 = vmatprep.subr.bf16.mxu0 0
    %988 = vmatpush1.bf16.msra.mxu0 0
    %989 = vmatprep.subr.bf16.mxu0 0
    %990 = vmatpush1.bf16.msra.mxu0 0
    %991 = vmatprep.subr.bf16.mxu0 0
    %992 = vmatpush1.bf16.msra.mxu0 0
    %993 = vmatprep.subr.bf16.mxu0 0
    %994 = vmatpush1.bf16.msra.mxu0 0
    %995 = vmatprep.subr.bf16.mxu0 0
    %996 = vmatpush1.bf16.msra.mxu0 0
    %997 = vmatprep.subr.bf16.mxu0 0
    %998 = vmatpush1.bf16.msra.mxu0 0
    %999 = vmatprep.subr.bf16.mxu0 0
    %1000 = vmatpush1.bf16.msra.mxu0 0
    %1001 = vmatprep.subr.bf16.mxu0 0
    %1002 = vmatpush1.bf16.msra.mxu0 0
    %1003 = vmatprep.subr.bf16.mxu0 0
    %1004 = vmatpush1.bf16.msra.mxu0 0
    %1005 = vmatprep.subr.bf16.mxu0 0
    %1006 = vmatpush1.bf16.msra.mxu0 0
    %1007 = vmatprep.mubr.bf16.mxu0 0
    %1008 = vmatmul.mubr.bf16.gmra.mrb[0].mxu0 %v809
    %v1009 = vpop.f32.mrb[0].mxu0
    %v1010 = vadd.f32 %v519, %v1009
    %v1011 = vpop.f32.mrb[0].mxu0
    %v1012 = vadd.f32 %v521, %v1011
    %v1013 = vpop.f32.mrb[0].mxu0
    %v1014 = vpop.f32.mrb[0].mxu0
    %1015 = vdwg.mxu0
    %1016 = vmatprep.subr.bf16.mxu0 %v755
    %1017 = vmatpush1.bf16.msra.mxu0 %v754
    %1018 = vmatprep.subr.bf16.mxu0 %v771
    %1019 = vmatpush1.bf16.msra.mxu0 %v770
    %1020 = vmatprep.subr.bf16.mxu0 0
    %1021 = vmatpush1.bf16.msra.mxu0 0
    %1022 = vmatprep.subr.bf16.mxu0 0
    %1023 = vmatpush1.bf16.msra.mxu0 0
    %1024 = vmatprep.subr.bf16.mxu0 0
    %1025 = vmatpush1.bf16.msra.mxu0 0
    %1026 = vmatprep.subr.bf16.mxu0 0
    %1027 = vmatpush1.bf16.msra.mxu0 0
    %1028 = vmatprep.subr.bf16.mxu0 0
    %1029 = vmatpush1.bf16.msra.mxu0 0
    %1030 = vmatprep.subr.bf16.mxu0 0
    %1031 = vmatpush1.bf16.msra.mxu0 0
    %1032 = vmatprep.subr.bf16.mxu0 0
    %1033 = vmatpush1.bf16.msra.mxu0 0
    %1034 = vmatprep.subr.bf16.mxu0 0
    %1035 = vmatpush1.bf16.msra.mxu0 0
    %1036 = vmatprep.subr.bf16.mxu0 0
    %1037 = vmatpush1.bf16.msra.mxu0 0
    %1038 = vmatprep.subr.bf16.mxu0 0
    %1039 = vmatpush1.bf16.msra.mxu0 0
    %1040 = vmatprep.subr.bf16.mxu0 0
    %1041 = vmatpush1.bf16.msra.mxu0 0
    %1042 = vmatprep.subr.bf16.mxu0 0
    %1043 = vmatpush1.bf16.msra.mxu0 0
    %1044 = vmatprep.subr.bf16.mxu0 0
    %1045 = vmatpush1.bf16.msra.mxu0 0
    %1046 = vmatprep.subr.bf16.mxu0 0
    %1047 = vmatpush1.bf16.msra.mxu0 0
    %1048 = vmatprep.mubr.bf16.mxu0 0
    %1049 = vmatmul.mubr.bf16.gmra.mrb[0].mxu0 %v809
    %v1050 = vpop.f32.mrb[0].mxu0
    %v1051 = vadd.f32 %v560, %v1050
    %v1052 = vpop.f32.mrb[0].mxu0
    %v1053 = vadd.f32 %v562, %v1052
    %v1054 = vpop.f32.mrb[0].mxu0
    %v1055 = vpop.f32.mrb[0].mxu0
    %1056 = vdwg.mxu0
    %1057 = vmatprep.subr.bf16.mxu0 %v757
    %1058 = vmatpush1.bf16.msra.mxu0 %v756
    %1059 = vmatprep.subr.bf16.mxu0 %v773
    %1060 = vmatpush1.bf16.msra.mxu0 %v772
    %1061 = vmatprep.subr.bf16.mxu0 0
    %1062 = vmatpush1.bf16.msra.mxu0 0
    %1063 = vmatprep.subr.bf16.mxu0 0
    %1064 = vmatpush1.bf16.msra.mxu0 0
    %1065 = vmatprep.subr.bf16.mxu0 0
    %1066 = vmatpush1.bf16.msra.mxu0 0
    %1067 = vmatprep.subr.bf16.mxu0 0
    %1068 = vmatpush1.bf16.msra.mxu0 0
    %1069 = vmatprep.subr.bf16.mxu0 0
    %1070 = vmatpush1.bf16.msra.mxu0 0
    %1071 = vmatprep.subr.bf16.mxu0 0
    %1072 = vmatpush1.bf16.msra.mxu0 0
    %1073 = vmatprep.subr.bf16.mxu0 0
    %1074 = vmatpush1.bf16.msra.mxu0 0
    %1075 = vmatprep.subr.bf16.mxu0 0
    %1076 = vmatpush1.bf16.msra.mxu0 0
    %1077 = vmatprep.subr.bf16.mxu0 0
    %1078 = vmatpush1.bf16.msra.mxu0 0
    %1079 = vmatprep.subr.bf16.mxu0 0
    %1080 = vmatpush1.bf16.msra.mxu0 0
    %1081 = vmatprep.subr.bf16.mxu0 0
    %1082 = vmatpush1.bf16.msra.mxu0 0
    %1083 = vmatprep.subr.bf16.mxu0 0
    %1084 = vmatpush1.bf16.msra.mxu0 0
    %1085 = vmatprep.subr.bf16.mxu0 0
    %1086 = vmatpush1.bf16.msra.mxu0 0
    %1087 = vmatprep.subr.bf16.mxu0 0
    %1088 = vmatpush1.bf16.msra.mxu0 0
    %1089 = vmatprep.mubr.bf16.mxu0 0
    %1090 = vmatmul.mubr.bf16.gmra.mrb[0].mxu0 %v809
    %v1091 = vpop.f32.mrb[0].mxu0
    %v1092 = vadd.f32 %v601, %v1091
    %v1093 = vpop.f32.mrb[0].mxu0
    %v1094 = vadd.f32 %v603, %v1093
    %v1095 = vpop.f32.mrb[0].mxu0
    %v1096 = vpop.f32.mrb[0].mxu0
    %1097 = vdwg.mxu0
    %1098 = vmatprep.subr.bf16.mxu0 %v759
    %1099 = vmatpush1.bf16.msra.mxu0 %v758
    %1100 = vmatprep.subr.bf16.mxu0 %v775
    %1101 = vmatpush1.bf16.msra.mxu0 %v774
    %1102 = vmatprep.subr.bf16.mxu0 0
    %1103 = vmatpush1.bf16.msra.mxu0 0
    %1104 = vmatprep.subr.bf16.mxu0 0
    %1105 = vmatpush1.bf16.msra.mxu0 0
    %1106 = vmatprep.subr.bf16.mxu0 0
    %1107 = vmatpush1.bf16.msra.mxu0 0
    %1108 = vmatprep.subr.bf16.mxu0 0
    %1109 = vmatpush1.bf16.msra.mxu0 0
    %1110 = vmatprep.subr.bf16.mxu0 0
    %1111 = vmatpush1.bf16.msra.mxu0 0
    %1112 = vmatprep.subr.bf16.mxu0 0
    %1113 = vmatpush1.bf16.msra.mxu0 0
    %1114 = vmatprep.subr.bf16.mxu0 0
    %1115 = vmatpush1.bf16.msra.mxu0 0
    %1116 = vmatprep.subr.bf16.mxu0 0
    %1117 = vmatpush1.bf16.msra.mxu0 0
    %1118 = vmatprep.subr.bf16.mxu0 0
    %1119 = vmatpush1.bf16.msra.mxu0 0
    %1120 = vmatprep.subr.bf16.mxu0 0
    %1121 = vmatpush1.bf16.msra.mxu0 0
    %1122 = vmatprep.subr.bf16.mxu0 0
    %1123 = vmatpush1.bf16.msra.mxu0 0
    %1124 = vmatprep.subr.bf16.mxu0 0
    %1125 = vmatpush1.bf16.msra.mxu0 0
    %1126 = vmatprep.subr.bf16.mxu0 0
    %1127 = vmatpush1.bf16.msra.mxu0 0
    %1128 = vmatprep.subr.bf16.mxu0 0
    %1129 = vmatpush1.bf16.msra.mxu0 0
    %1130 = vmatprep.mubr.bf16.mxu0 0
    %1131 = vmatmul.mubr.bf16.gmra.mrb[0].mxu0 %v809
    %v1132 = vpop.f32.mrb[0].mxu0
    %v1133 = vadd.f32 %v642, %v1132
    %v1134 = vpop.f32.mrb[0].mxu0
    %v1135 = vadd.f32 %v644, %v1134
    %v1136 = vpop.f32.mrb[0].mxu0
    %v1137 = vpop.f32.mrb[0].mxu0
    %1138 = vdwg.mxu0
    %v1139 = vld [vmem:[%s4] sm:$0xff]
    %v1140 = vld [vmem:[%s4 + $0x8] sm:$0xff]
    %v1143 = vlaneseq
    %v1144 = vshrl.u32 %v1143, 7
    %v1145 = vsub.s32 0, %v1144
    %v1146 = vrot.slane %v1139, %v1145
    %v1147 = vlaneseq
    %v1148 = vshrl.u32 %v1147, 7
    %v1149 = vsub.s32 1, %v1148
    %v1150 = vrot.slane %v1139, %v1149
    %v1151 = vlaneseq
    %v1152 = vshrl.u32 %v1151, 7
    %v1153 = vsub.s32 2, %v1152
    %v1154 = vrot.slane %v1139, %v1153
    %v1155 = vlaneseq
    %v1156 = vshrl.u32 %v1155, 7
    %v1157 = vsub.s32 3, %v1156
    %v1158 = vrot.slane %v1139, %v1157
    %v1159 = vlaneseq
    %v1160 = vshrl.u32 %v1159, 7
    %v1161 = vsub.s32 4, %v1160
    %v1162 = vrot.slane %v1139, %v1161
    %v1163 = vlaneseq
    %v1164 = vshrl.u32 %v1163, 7
    %v1165 = vsub.s32 5, %v1164
    %v1166 = vrot.slane %v1139, %v1165
    %v1167 = vlaneseq
    %v1168 = vshrl.u32 %v1167, 7
    %v1169 = vsub.s32 6, %v1168
    %v1170 = vrot.slane %v1139, %v1169
    %v1171 = vlaneseq
    %v1172 = vshrl.u32 %v1171, 7
    %v1173 = vsub.s32 7, %v1172
    %v1174 = vrot.slane %v1139, %v1173
    %v1175 = vlaneseq
    %v1176 = vshrl.u32 %v1175, 7
    %v1177 = vsub.s32 0, %v1176
    %v1178 = vrot.slane %v1140, %v1177
    %v1179 = vlaneseq
    %v1180 = vshrl.u32 %v1179, 7
    %v1181 = vsub.s32 1, %v1180
    %v1182 = vrot.slane %v1140, %v1181
    %v1183 = vlaneseq
    %v1184 = vshrl.u32 %v1183, 7
    %v1185 = vsub.s32 2, %v1184
    %v1186 = vrot.slane %v1140, %v1185
    %v1187 = vlaneseq
    %v1188 = vshrl.u32 %v1187, 7
    %v1189 = vsub.s32 3, %v1188
    %v1190 = vrot.slane %v1140, %v1189
    %v1191 = vlaneseq
    %v1192 = vshrl.u32 %v1191, 7
    %v1193 = vsub.s32 4, %v1192
    %v1194 = vrot.slane %v1140, %v1193
    %v1195 = vlaneseq
    %v1196 = vshrl.u32 %v1195, 7
    %v1197 = vsub.s32 5, %v1196
    %v1198 = vrot.slane %v1140, %v1197
    %v1199 = vlaneseq
    %v1200 = vshrl.u32 %v1199, 7
    %v1201 = vsub.s32 6, %v1200
    %v1202 = vrot.slane %v1140, %v1201
    %v1203 = vlaneseq
    %v1204 = vshrl.u32 %v1203, 7
    %v1205 = vsub.s32 7, %v1204
    %v1206 = vrot.slane %v1140, %v1205
    %v1223 = vadd.f32 %v846, %v1146
    %v1224 = vadd.f32 %v848, %v1150
    %v1225 = vadd.f32 %v887, %v1154
    %v1226 = vadd.f32 %v889, %v1158
    %v1227 = vadd.f32 %v928, %v1162
    %v1228 = vadd.f32 %v930, %v1166
    %v1229 = vadd.f32 %v969, %v1170
    %v1230 = vadd.f32 %v971, %v1174
    %v1231 = vadd.f32 %v1010, %v1178
    %v1232 = vadd.f32 %v1012, %v1182
    %v1233 = vadd.f32 %v1051, %v1186
    %v1234 = vadd.f32 %v1053, %v1190
    %v1235 = vadd.f32 %v1092, %v1194
    %v1236 = vadd.f32 %v1094, %v1198
    %v1237 = vadd.f32 %v1133, %v1202
    %v1238 = vadd.f32 %v1135, %v1206
    %v1239 = vxor.u32 %v1223, 2147483648
    %v1240 = vxor.u32 %v1224, 2147483648
    %v1241 = vxor.u32 %v1225, 2147483648
    %v1242 = vxor.u32 %v1226, 2147483648
    %v1243 = vxor.u32 %v1227, 2147483648
    %v1244 = vxor.u32 %v1228, 2147483648
    %v1245 = vxor.u32 %v1229, 2147483648
    %v1246 = vxor.u32 %v1230, 2147483648
    %v1247 = vxor.u32 %v1231, 2147483648
    %v1248 = vxor.u32 %v1232, 2147483648
    %v1249 = vxor.u32 %v1233, 2147483648
    %v1250 = vxor.u32 %v1234, 2147483648
    %v1251 = vxor.u32 %v1235, 2147483648
    %v1252 = vxor.u32 %v1236, 2147483648
    %v1253 = vxor.u32 %v1237, 2147483648
    %v1254 = vxor.u32 %v1238, 2147483648
    %v1255 = vmul.f32 %v1239, 1.442695
    %v1256 = vpow.pop %v1255
    %v1257 = vmul.f32 %v1240, 1.442695
    %v1258 = vpow.pop %v1257
    %v1259 = vmul.f32 %v1241, 1.442695
    %v1260 = vpow.pop %v1259
    %v1261 = vmul.f32 %v1242, 1.442695
    %v1262 = vpow.pop %v1261
    %v1263 = vmul.f32 %v1243, 1.442695
    %v1264 = vpow.pop %v1263
    %v1265 = vmul.f32 %v1244, 1.442695
    %v1266 = vpow.pop %v1265
    %v1267 = vmul.f32 %v1245, 1.442695
    %v1268 = vpow.pop %v1267
    %v1269 = vmul.f32 %v1246, 1.442695
    %v1270 = vpow.pop %v1269
    %v1271 = vmul.f32 %v1247, 1.442695
    %v1272 = vpow.pop %v1271
    %v1273 = vmul.f32 %v1248, 1.442695
    %v1274 = vpow.pop %v1273
    %v1275 = vmul.f32 %v1249, 1.442695
    %v1276 = vpow.pop %v1275
    %v1277 = vmul.f32 %v1250, 1.442695
    %v1278 = vpow.pop %v1277
    %v1279 = vmul.f32 %v1251, 1.442695
    %v1280 = vpow.pop %v1279
    %v1281 = vmul.f32 %v1252, 1.442695
    %v1282 = vpow.pop %v1281
    %v1283 = vmul.f32 %v1253, 1.442695
    %v1284 = vpow.pop %v1283
    %v1285 = vmul.f32 %v1254, 1.442695
    %v1286 = vpow.pop %v1285
    %v1287 = vadd.f32 %v1256, 1.0
    %v1288 = vadd.f32 %v1258, 1.0
    %v1289 = vadd.f32 %v1260, 1.0
    %v1290 = vadd.f32 %v1262, 1.0
    %v1291 = vadd.f32 %v1264, 1.0
    %v1292 = vadd.f32 %v1266, 1.0
    %v1293 = vadd.f32 %v1268, 1.0
    %v1294 = vadd.f32 %v1270, 1.0
    %v1295 = vadd.f32 %v1272, 1.0
    %v1296 = vadd.f32 %v1274, 1.0
    %v1297 = vadd.f32 %v1276, 1.0
    %v1298 = vadd.f32 %v1278, 1.0
    %v1299 = vadd.f32 %v1280, 1.0
    %v1300 = vadd.f32 %v1282, 1.0
    %v1301 = vadd.f32 %v1284, 1.0
    %v1302 = vadd.f32 %v1286, 1.0
    %v1303 = vrcp.pop %v1287
    %v1304 = vmul.f32 1.0, %v1303
    %v1305 = vrcp.pop %v1288
    %v1306 = vmul.f32 1.0, %v1305
    %v1307 = vrcp.pop %v1289
    %v1308 = vmul.f32 1.0, %v1307
    %v1309 = vrcp.pop %v1290
    %v1310 = vmul.f32 1.0, %v1309
    %v1311 = vrcp.pop %v1291
    %v1312 = vmul.f32 1.0, %v1311
    %v1313 = vrcp.pop %v1292
    %v1314 = vmul.f32 1.0, %v1313
    %v1315 = vrcp.pop %v1293
    %v1316 = vmul.f32 1.0, %v1315
    %v1317 = vrcp.pop %v1294
    %v1318 = vmul.f32 1.0, %v1317
    %v1319 = vrcp.pop %v1295
    %v1320 = vmul.f32 1.0, %v1319
    %v1321 = vrcp.pop %v1296
    %v1322 = vmul.f32 1.0, %v1321
    %v1323 = vrcp.pop %v1297
    %v1324 = vmul.f32 1.0, %v1323
    %v1325 = vrcp.pop %v1298
    %v1326 = vmul.f32 1.0, %v1325
    %v1327 = vrcp.pop %v1299
    %v1328 = vmul.f32 1.0, %v1327
    %v1329 = vrcp.pop %v1300
    %v1330 = vmul.f32 1.0, %v1329
    %v1331 = vrcp.pop %v1301
    %v1332 = vmul.f32 1.0, %v1331
    %v1333 = vrcp.pop %v1302
    %v1334 = vmul.f32 1.0, %v1333
    %v1335 = vld [vmem:[#allocation10] sm:$0xff]
    %v1336 = vld [vmem:[#allocation10 + $0x8] sm:$0xff]
    %v1339 = vlaneseq
    %v1340 = vshrl.u32 %v1339, 7
    %v1341 = vsub.s32 0, %v1340
    %v1342 = vrot.slane %v1335, %v1341
    %v1343 = vlaneseq
    %v1344 = vshrl.u32 %v1343, 7
    %v1345 = vsub.s32 1, %v1344
    %v1346 = vrot.slane %v1335, %v1345
    %v1347 = vlaneseq
    %v1348 = vshrl.u32 %v1347, 7
    %v1349 = vsub.s32 2, %v1348
    %v1350 = vrot.slane %v1335, %v1349
    %v1351 = vlaneseq
    %v1352 = vshrl.u32 %v1351, 7
    %v1353 = vsub.s32 3, %v1352
    %v1354 = vrot.slane %v1335, %v1353
    %v1355 = vlaneseq
    %v1356 = vshrl.u32 %v1355, 7
    %v1357 = vsub.s32 4, %v1356
    %v1358 = vrot.slane %v1335, %v1357
    %v1359 = vlaneseq
    %v1360 = vshrl.u32 %v1359, 7
    %v1361 = vsub.s32 5, %v1360
    %v1362 = vrot.slane %v1335, %v1361
    %v1363 = vlaneseq
    %v1364 = vshrl.u32 %v1363, 7
    %v1365 = vsub.s32 6, %v1364
    %v1366 = vrot.slane %v1335, %v1365
    %v1367 = vlaneseq
    %v1368 = vshrl.u32 %v1367, 7
    %v1369 = vsub.s32 7, %v1368
    %v1370 = vrot.slane %v1335, %v1369
    %v1371 = vlaneseq
    %v1372 = vshrl.u32 %v1371, 7
    %v1373 = vsub.s32 0, %v1372
    %v1374 = vrot.slane %v1336, %v1373
    %v1375 = vlaneseq
    %v1376 = vshrl.u32 %v1375, 7
    %v1377 = vsub.s32 1, %v1376
    %v1378 = vrot.slane %v1336, %v1377
    %v1379 = vlaneseq
    %v1380 = vshrl.u32 %v1379, 7
    %v1381 = vsub.s32 2, %v1380
    %v1382 = vrot.slane %v1336, %v1381
    %v1383 = vlaneseq
    %v1384 = vshrl.u32 %v1383, 7
    %v1385 = vsub.s32 3, %v1384
    %v1386 = vrot.slane %v1336, %v1385
    %v1387 = vlaneseq
    %v1388 = vshrl.u32 %v1387, 7
    %v1389 = vsub.s32 4, %v1388
    %v1390 = vrot.slane %v1336, %v1389
    %v1391 = vlaneseq
    %v1392 = vshrl.u32 %v1391, 7
    %v1393 = vsub.s32 5, %v1392
    %v1394 = vrot.slane %v1336, %v1393
    %v1395 = vlaneseq
    %v1396 = vshrl.u32 %v1395, 7
    %v1397 = vsub.s32 6, %v1396
    %v1398 = vrot.slane %v1336, %v1397
    %v1399 = vlaneseq
    %v1400 = vshrl.u32 %v1399, 7
    %v1401 = vsub.s32 7, %v1400
    %v1402 = vrot.slane %v1336, %v1401
    %v1419 = vmul.f32 %v1304, %v1342
    %v1420 = vmul.f32 %v1306, %v1346
    %v1421 = vmul.f32 %v1308, %v1350
    %v1422 = vmul.f32 %v1310, %v1354
    %v1423 = vmul.f32 %v1312, %v1358
    %v1424 = vmul.f32 %v1314, %v1362
    %v1425 = vmul.f32 %v1316, %v1366
    %v1426 = vmul.f32 %v1318, %v1370
    %v1427 = vmul.f32 %v1320, %v1374
    %v1428 = vmul.f32 %v1322, %v1378
    %v1429 = vmul.f32 %v1324, %v1382
    %v1430 = vmul.f32 %v1326, %v1386
    %v1431 = vmul.f32 %v1328, %v1390
    %v1432 = vmul.f32 %v1330, %v1394
    %v1433 = vmul.f32 %v1332, %v1398
    %v1434 = vmul.f32 %v1334, %v1402
    %v1435 = vadd.f32 %v1419, %v1420
    %v1436 = vadd.f32 %v1435, %v1421
    %v1437 = vadd.f32 %v1436, %v1422
    %v1438 = vadd.f32 %v1437, %v1423
    %v1439 = vadd.f32 %v1438, %v1424
    %v1440 = vadd.f32 %v1439, %v1425
    %v1441 = vadd.f32 %v1440, %v1426
    %v1442 = vadd.f32 %v1441, %v1427
    %v1443 = vadd.f32 %v1442, %v1428
    %v1444 = vadd.f32 %v1443, %v1429
    %v1445 = vadd.f32 %v1444, %v1430
    %v1446 = vadd.f32 %v1445, %v1431
    %v1447 = vadd.f32 %v1446, %v1432
    %v1448 = vadd.f32 %v1447, %v1433
    %v1449 = vadd.f32 %v1448, %v1434
    %1450 = vadd.xlane.f32.xlu0 %v1449
    %v1451 = vpop.xlane.xlu0 %1450
    %s1452 = sld [smem:[#allocation2]]
    %v1453 = vstv %s1452
    %v1454 = vadd.f32 %v1451, %v1453
    %v1455 = vxor.u32 %v1454, 2147483648
    %v1456 = vmul.f32 %v1455, 1.442695
    %v1457 = vpow.pop %v1456
    %v1458 = vadd.f32 %v1457, 1.0
    %v1459 = vrcp.pop %v1458
    %v1460 = vmul.f32 1.0, %v1459
    %vm1461 = vcmask 7168
    %1462 = vst.msk [vmem:[%s7] sm:$0xff] %vm1461, %v1460
    // Predicated region
    $region50: #{tpu_custom_call.1} parent=1 // pred_check
      _
    $region51: #{tpu_custom_call.1} parent=1 // pred_check_branch
      %1464 = sbr.rel (0) target = $region53
    $region52: #{tpu_custom_call.1} parent=1 // pred_region
      _
    $region53: #{tpu_custom_call.1} parent=1 // pred_fallthru
      _
    // Predicated region
    $region54: #{tpu_custom_call.1} parent=1 // pred_check
      _
    $region55: #{tpu_custom_call.1} parent=1 // pred_check_branch
      %1466 = sbr.rel (0) target = $region57
    $region56: #{tpu_custom_call.1} parent=1 // pred_region
      _
    $region57: #{tpu_custom_call.1} parent=1 // pred_fallthru
      _
    %1467 = vsyncpa [#allocation4], 1
    %1468 = vsyncpa [#allocation6], 1
    %1469 = vsyncpa [#allocation9], 1

</llo_original>
